<compile_context>
chip_gen: v5e
topology: v5e:2x2
jax: 0.10.0
libtpu: 0.0.40
codegen_flags: <defaults>
</compile_context>

<pallas_src>
import functools

import jax
import jax.numpy as jnp
from jax.experimental import pallas as pl
from jax.experimental.pallas import tpu as pltpu


def _attention_kernel(q_ref, k_ref, v_ref, o_ref, *, scale, n_heads, e_dim, d_dim):
    """Per-batch kernel.

    q_ref: (L, H*E)   heads folded into the lane axis (lane-dense loads)
    k_ref: (S, H*D)
    v_ref: (S, H*D)
    o_ref: (L, H*D)   lane-dense output slab
    """
    q = q_ref[...].astype(jnp.float32)
    k = k_ref[...].astype(jnp.float32)
    v = v_ref[...].astype(jnp.float32)

    outs = []
    for h in range(n_heads):  # H is small -> static unroll (flat code for LLO)
        q_h = q[:, h * e_dim:(h + 1) * e_dim]   # (L, E) static lane slice
        k_h = k[:, h * d_dim:(h + 1) * d_dim]   # (S, D)
        v_h = v[:, h * d_dim:(h + 1) * d_dim]   # (S, D)

        # einsum('blhe,bshd->bhls') with distinct e/d letters == outer product
        # of per-row sums.  Fold `scale` into the q-sum (L mults, not L*S).
        qs = jnp.sum(q_h, axis=-1, keepdims=True) * scale   # (L, 1)
        ks = jnp.sum(k_h, axis=-1, keepdims=True)            # (S, 1)
        ks_row = ks.T                                         # (1, S) via XLU

        # Row max of the rank-1 score matrix without materializing an (L, S)
        # cross-lane reduce: max_s(qs*ks[s]) == qs*max(ks) if qs>=0 else
        # qs*min(ks).  Bit-identical to jnp.max(scores, -1) because fp
        # multiplication is monotone in each operand.
        ks_max = jnp.max(ks, axis=0, keepdims=True)           # (1, 1)
        ks_min = jnp.min(ks, axis=0, keepdims=True)           # (1, 1)
        m = qs * jnp.where(qs >= 0, ks_max, ks_min)           # (L, 1)

        # Softmax numerator over S; normalization deferred to the (L, D)
        # output below.  exp -> EUP, broadcast mul/sub -> VPU.
        p = jnp.exp(qs * ks_row - m)                           # (L, S)
        denom = jnp.sum(p, axis=-1, keepdims=True)             # (L, 1)
        # dropout(p=0.1) is identity in eval/inference mode.
        # TODO(synk): training-mode dropout (pltpu.prng_seed/prng_random_bits
        #             mask + 1/(1-p) rescale) not implemented; inference only.

        out_h = jnp.dot(p, v_h, preferred_element_type=jnp.float32)  # (L, D) MXU
        # approx=False keeps the strict 1e-5 self-check below exact; for
        # production, approx=True routes to the otherwise-idle EUP slot.
        outs.append(out_h * pl.reciprocal(denom, approx=False))

    # Single full-block store (lane-dense) instead of H narrow masked stores.
    o_ref[...] = jnp.concatenate(outs, axis=-1).astype(o_ref.dtype)


def attention_forward(q, k, v):
    """q: (B, L, H, E), k: (B, S, H, D), v: (B, S, H, D) -> (B, L, H, D)."""
    B, L, H, E = q.shape
    _, S, _, D = k.shape
    scale = float(E) ** (-0.5)

    # Fold heads into the last (lane) axis.  These reshapes merge contiguous
    # trailing dims (no data movement) and make every Pallas block lane-dense.
    q2 = q.reshape(B, L, H * E)
    k2 = k.reshape(B, S, H * D)
    v2 = v.reshape(B, S, H * D)

    out2 = pl.pallas_call(
        functools.partial(_attention_kernel, scale=scale, n_heads=H,
                          e_dim=E, d_dim=D),
        out_shape=jax.ShapeDtypeStruct((B, L, H * D), q.dtype),
        grid=(B,),
        in_specs=[
            pl.BlockSpec((None, L, H * E), lambda b: (b, 0, 0)),
            pl.BlockSpec((None, S, H * D), lambda b: (b, 0, 0)),
            pl.BlockSpec((None, S, H * D), lambda b: (b, 0, 0)),
        ],
        out_specs=pl.BlockSpec((None, L, H * D), lambda b: (b, 0, 0)),
        compiler_params=pltpu.CompilerParams(
            dimension_semantics=("parallel",)),
    )(q2, k2, v2)

    # TODO(synk): for production-scale L/S (thousands), tile L and S with a
    #             flash-style online softmax (S axis "arbitrary") and budget
    #             tiles against v7x's 64 MiB VMEM; unnecessary at these shapes.
    return out2.reshape(B, L, H, D)


def _reference(q, k, v):
    """Pure-JAX reference with the exact torch.einsum semantics."""
    E = q.shape[-1]
    scale = float(E) ** (-0.5)
    scores = jnp.einsum('blhe,bshd->bhls', q, k)
    attn = jax.nn.softmax(scores * scale, axis=-1)
    return jnp.einsum('bhls,bshd->blhd', attn, v)


if __name__ == "__main__":
    # Small shapes consistent with the module's forward: (B, L, H, E) / (B, S, H, D)
    B, L, S, H, E, D = 2, 8, 8, 4, 16, 16
    key = jax.random.PRNGKey(0)
    kq, kk, kv = jax.random.split(key, 3)
    q = jax.random.normal(kq, (B, L, H, E), dtype=jnp.float32)
    k = jax.random.normal(kk, (B, S, H, D), dtype=jnp.float32)
    v = jax.random.normal(kv, (B, S, H, D), dtype=jnp.float32)

    out = attention_forward(q, k, v)
    out = jax.block_until_ready(out)

    ref = _reference(q, k, v)
    assert out.shape == (B, L, H, D)
    assert jnp.allclose(out, ref, atol=1e-5, rtol=1e-5), "mismatch vs reference"

    print("KERNEL_OK")
</pallas_src>

<mosaic_0001>
module attributes {stable_mosaic.version = 11 : i64} {
  func.func @_attention_kernel(%arg0: i32, %arg1: memref<1x8x64xf32, #tpu.memory_space<vmem>>, %arg2: memref<1x8x64xf32, #tpu.memory_space<vmem>>, %arg3: memref<1x8x64xf32, #tpu.memory_space<vmem>>, %arg4: memref<1x8x64xf32, #tpu.memory_space<vmem>>) attributes {dimension_semantics = [#tpu.dimension_semantics<parallel>], iteration_bounds = array<i64: 2>, scalar_prefetch = 0 : i64, scratch_operands = 0 : i64, tpu.core_type = #tpu.core_type<tc>, window_params = [{transform_indices = @transform_0, window_bounds = array<i64: 1, 8, 64>}, {transform_indices = @transform_1, window_bounds = array<i64: 1, 8, 64>}, {transform_indices = @transform_2, window_bounds = array<i64: 1, 8, 64>}, {transform_indices = @transform_3, window_bounds = array<i64: 1, 8, 64>}]} {
    %c0 = arith.constant 0 : index
    %c0_0 = arith.constant 0 : index
    %c0_1 = arith.constant 0 : index
    %0 = vector.load %arg1[%c0, %c0_0, %c0_1] : memref<1x8x64xf32, #tpu.memory_space<vmem>>, vector<1x8x64xf32>
    %1 = vector.shape_cast %0 : vector<1x8x64xf32> to vector<8x64xf32>
    %c0_2 = arith.constant 0 : index
    %c0_3 = arith.constant 0 : index
    %c0_4 = arith.constant 0 : index
    %2 = vector.load %arg2[%c0_2, %c0_3, %c0_4] : memref<1x8x64xf32, #tpu.memory_space<vmem>>, vector<1x8x64xf32>
    %3 = vector.shape_cast %2 : vector<1x8x64xf32> to vector<8x64xf32>
    %c0_5 = arith.constant 0 : index
    %c0_6 = arith.constant 0 : index
    %c0_7 = arith.constant 0 : index
    %4 = vector.load %arg3[%c0_5, %c0_6, %c0_7] : memref<1x8x64xf32, #tpu.memory_space<vmem>>, vector<1x8x64xf32>
    %5 = vector.shape_cast %4 : vector<1x8x64xf32> to vector<8x64xf32>
    %6 = vector.extract_strided_slice %1 {offsets = [0, 0], sizes = [8, 16], strides = [1, 1]} : vector<8x64xf32> to vector<8x16xf32>
    %7 = vector.extract_strided_slice %3 {offsets = [0, 0], sizes = [8, 16], strides = [1, 1]} : vector<8x64xf32> to vector<8x16xf32>
    %8 = vector.extract_strided_slice %5 {offsets = [0, 0], sizes = [8, 16], strides = [1, 1]} : vector<8x64xf32> to vector<8x16xf32>
    %cst = arith.constant dense<0.000000e+00> : vector<8xf32>
    %9 = vector.multi_reduction <add>, %6, %cst [1] : vector<8x16xf32> to vector<8xf32>
    %10 = vector.shape_cast %9 : vector<8xf32> to vector<8x1xf32>
    %cst_8 = arith.constant 2.500000e-01 : f32
    %11 = vector.broadcast %cst_8 : f32 to vector<8x1xf32>
    %12 = arith.mulf %10, %11 : vector<8x1xf32>
    %cst_9 = arith.constant dense<0.000000e+00> : vector<8xf32>
    %13 = vector.multi_reduction <add>, %7, %cst_9 [1] : vector<8x16xf32> to vector<8xf32>
    %14 = vector.shape_cast %13 : vector<8xf32> to vector<8x1xf32>
    %15 = tpu.transpose %14, [1, 0] : vector<8x1xf32> -> vector<1x8xf32>
    %cst_10 = arith.constant dense<0xFF800000> : vector<1xf32>
    %16 = vector.multi_reduction <maximumf>, %14, %cst_10 [0] : vector<8x1xf32> to vector<1xf32>
    %17 = vector.shape_cast %16 : vector<1xf32> to vector<1x1xf32>
    %cst_11 = arith.constant dense<0x7F800000> : vector<1xf32>
    %18 = vector.multi_reduction <minimumf>, %14, %cst_11 [0] : vector<8x1xf32> to vector<1xf32>
    %19 = vector.shape_cast %18 : vector<1xf32> to vector<1x1xf32>
    %cst_12 = arith.constant 0.000000e+00 : f32
    %20 = vector.broadcast %cst_12 : f32 to vector<8x1xf32>
    %21 = arith.cmpf oge, %12, %20 : vector<8x1xf32>
    %22 = vector.shape_cast %17 : vector<1x1xf32> to vector<1x1xf32>
    %23 = vector.broadcast %22 : vector<1x1xf32> to vector<8x1xf32>
    %24 = vector.shape_cast %19 : vector<1x1xf32> to vector<1x1xf32>
    %25 = vector.broadcast %24 : vector<1x1xf32> to vector<8x1xf32>
    %26 = arith.select %21, %23, %25 : vector<8x1xi1>, vector<8x1xf32>
    %27 = arith.mulf %12, %26 : vector<8x1xf32>
    %28 = vector.broadcast %12 : vector<8x1xf32> to vector<8x8xf32>
    %29 = vector.broadcast %15 : vector<1x8xf32> to vector<8x8xf32>
    %30 = arith.mulf %28, %29 : vector<8x8xf32>
    %31 = vector.broadcast %27 : vector<8x1xf32> to vector<8x8xf32>
    %32 = arith.subf %30, %31 : vector<8x8xf32>
    %33 = math.exp %32 : vector<8x8xf32>
    %cst_13 = arith.constant dense<0.000000e+00> : vector<8xf32>
    %34 = vector.multi_reduction <add>, %33, %cst_13 [1] : vector<8x8xf32> to vector<8xf32>
    %35 = vector.shape_cast %34 : vector<8xf32> to vector<8x1xf32>
    %cst_14 = arith.constant dense<0.000000e+00> : vector<8x16xf32>
    %36 = tpu.matmul %33, %8, %cst_14 {dimension_numbers = #tpu.dot_dimension_numbers<[1], [0], [0], [1], [0, 0, 1, 1], [], []>} : vector<8x8xf32>, vector<8x16xf32>, vector<8x16xf32> -> vector<8x16xf32>
    %37 = tpu.reciprocal %35 : vector<8x1xf32> -> vector<8x1xf32>
    %38 = vector.broadcast %37 : vector<8x1xf32> to vector<8x16xf32>
    %39 = arith.mulf %36, %38 : vector<8x16xf32>
    %40 = vector.extract_strided_slice %1 {offsets = [0, 16], sizes = [8, 16], strides = [1, 1]} : vector<8x64xf32> to vector<8x16xf32>
    %41 = vector.extract_strided_slice %3 {offsets = [0, 16], sizes = [8, 16], strides = [1, 1]} : vector<8x64xf32> to vector<8x16xf32>
    %42 = vector.extract_strided_slice %5 {offsets = [0, 16], sizes = [8, 16], strides = [1, 1]} : vector<8x64xf32> to vector<8x16xf32>
    %cst_15 = arith.constant dense<0.000000e+00> : vector<8xf32>
    %43 = vector.multi_reduction <add>, %40, %cst_15 [1] : vector<8x16xf32> to vector<8xf32>
    %44 = vector.shape_cast %43 : vector<8xf32> to vector<8x1xf32>
    %cst_16 = arith.constant 2.500000e-01 : f32
    %45 = vector.broadcast %cst_16 : f32 to vector<8x1xf32>
    %46 = arith.mulf %44, %45 : vector<8x1xf32>
    %cst_17 = arith.constant dense<0.000000e+00> : vector<8xf32>
    %47 = vector.multi_reduction <add>, %41, %cst_17 [1] : vector<8x16xf32> to vector<8xf32>
    %48 = vector.shape_cast %47 : vector<8xf32> to vector<8x1xf32>
    %49 = tpu.transpose %48, [1, 0] : vector<8x1xf32> -> vector<1x8xf32>
    %cst_18 = arith.constant dense<0xFF800000> : vector<1xf32>
    %50 = vector.multi_reduction <maximumf>, %48, %cst_18 [0] : vector<8x1xf32> to vector<1xf32>
    %51 = vector.shape_cast %50 : vector<1xf32> to vector<1x1xf32>
    %cst_19 = arith.constant dense<0x7F800000> : vector<1xf32>
    %52 = vector.multi_reduction <minimumf>, %48, %cst_19 [0] : vector<8x1xf32> to vector<1xf32>
    %53 = vector.shape_cast %52 : vector<1xf32> to vector<1x1xf32>
    %cst_20 = arith.constant 0.000000e+00 : f32
    %54 = vector.broadcast %cst_20 : f32 to vector<8x1xf32>
    %55 = arith.cmpf oge, %46, %54 : vector<8x1xf32>
    %56 = vector.shape_cast %51 : vector<1x1xf32> to vector<1x1xf32>
    %57 = vector.broadcast %56 : vector<1x1xf32> to vector<8x1xf32>
    %58 = vector.shape_cast %53 : vector<1x1xf32> to vector<1x1xf32>
    %59 = vector.broadcast %58 : vector<1x1xf32> to vector<8x1xf32>
    %60 = arith.select %55, %57, %59 : vector<8x1xi1>, vector<8x1xf32>
    %61 = arith.mulf %46, %60 : vector<8x1xf32>
    %62 = vector.broadcast %46 : vector<8x1xf32> to vector<8x8xf32>
    %63 = vector.broadcast %49 : vector<1x8xf32> to vector<8x8xf32>
    %64 = arith.mulf %62, %63 : vector<8x8xf32>
    %65 = vector.broadcast %61 : vector<8x1xf32> to vector<8x8xf32>
    %66 = arith.subf %64, %65 : vector<8x8xf32>
    %67 = math.exp %66 : vector<8x8xf32>
    %cst_21 = arith.constant dense<0.000000e+00> : vector<8xf32>
    %68 = vector.multi_reduction <add>, %67, %cst_21 [1] : vector<8x8xf32> to vector<8xf32>
    %69 = vector.shape_cast %68 : vector<8xf32> to vector<8x1xf32>
    %cst_22 = arith.constant dense<0.000000e+00> : vector<8x16xf32>
    %70 = tpu.matmul %67, %42, %cst_22 {dimension_numbers = #tpu.dot_dimension_numbers<[1], [0], [0], [1], [0, 0, 1, 1], [], []>} : vector<8x8xf32>, vector<8x16xf32>, vector<8x16xf32> -> vector<8x16xf32>
    %71 = tpu.reciprocal %69 : vector<8x1xf32> -> vector<8x1xf32>
    %72 = vector.broadcast %71 : vector<8x1xf32> to vector<8x16xf32>
    %73 = arith.mulf %70, %72 : vector<8x16xf32>
    %74 = vector.extract_strided_slice %1 {offsets = [0, 32], sizes = [8, 16], strides = [1, 1]} : vector<8x64xf32> to vector<8x16xf32>
    %75 = vector.extract_strided_slice %3 {offsets = [0, 32], sizes = [8, 16], strides = [1, 1]} : vector<8x64xf32> to vector<8x16xf32>
    %76 = vector.extract_strided_slice %5 {offsets = [0, 32], sizes = [8, 16], strides = [1, 1]} : vector<8x64xf32> to vector<8x16xf32>
    %cst_23 = arith.constant dense<0.000000e+00> : vector<8xf32>
    %77 = vector.multi_reduction <add>, %74, %cst_23 [1] : vector<8x16xf32> to vector<8xf32>
    %78 = vector.shape_cast %77 : vector<8xf32> to vector<8x1xf32>
    %cst_24 = arith.constant 2.500000e-01 : f32
    %79 = vector.broadcast %cst_24 : f32 to vector<8x1xf32>
    %80 = arith.mulf %78, %79 : vector<8x1xf32>
    %cst_25 = arith.constant dense<0.000000e+00> : vector<8xf32>
    %81 = vector.multi_reduction <add>, %75, %cst_25 [1] : vector<8x16xf32> to vector<8xf32>
    %82 = vector.shape_cast %81 : vector<8xf32> to vector<8x1xf32>
    %83 = tpu.transpose %82, [1, 0] : vector<8x1xf32> -> vector<1x8xf32>
    %cst_26 = arith.constant dense<0xFF800000> : vector<1xf32>
    %84 = vector.multi_reduction <maximumf>, %82, %cst_26 [0] : vector<8x1xf32> to vector<1xf32>
    %85 = vector.shape_cast %84 : vector<1xf32> to vector<1x1xf32>
    %cst_27 = arith.constant dense<0x7F800000> : vector<1xf32>
    %86 = vector.multi_reduction <minimumf>, %82, %cst_27 [0] : vector<8x1xf32> to vector<1xf32>
    %87 = vector.shape_cast %86 : vector<1xf32> to vector<1x1xf32>
    %cst_28 = arith.constant 0.000000e+00 : f32
    %88 = vector.broadcast %cst_28 : f32 to vector<8x1xf32>
    %89 = arith.cmpf oge, %80, %88 : vector<8x1xf32>
    %90 = vector.shape_cast %85 : vector<1x1xf32> to vector<1x1xf32>
    %91 = vector.broadcast %90 : vector<1x1xf32> to vector<8x1xf32>
    %92 = vector.shape_cast %87 : vector<1x1xf32> to vector<1x1xf32>
    %93 = vector.broadcast %92 : vector<1x1xf32> to vector<8x1xf32>
    %94 = arith.select %89, %91, %93 : vector<8x1xi1>, vector<8x1xf32>
    %95 = arith.mulf %80, %94 : vector<8x1xf32>
    %96 = vector.broadcast %80 : vector<8x1xf32> to vector<8x8xf32>
    %97 = vector.broadcast %83 : vector<1x8xf32> to vector<8x8xf32>
    %98 = arith.mulf %96, %97 : vector<8x8xf32>
    %99 = vector.broadcast %95 : vector<8x1xf32> to vector<8x8xf32>
    %100 = arith.subf %98, %99 : vector<8x8xf32>
    %101 = math.exp %100 : vector<8x8xf32>
    %cst_29 = arith.constant dense<0.000000e+00> : vector<8xf32>
    %102 = vector.multi_reduction <add>, %101, %cst_29 [1] : vector<8x8xf32> to vector<8xf32>
    %103 = vector.shape_cast %102 : vector<8xf32> to vector<8x1xf32>
    %cst_30 = arith.constant dense<0.000000e+00> : vector<8x16xf32>
    %104 = tpu.matmul %101, %76, %cst_30 {dimension_numbers = #tpu.dot_dimension_numbers<[1], [0], [0], [1], [0, 0, 1, 1], [], []>} : vector<8x8xf32>, vector<8x16xf32>, vector<8x16xf32> -> vector<8x16xf32>
    %105 = tpu.reciprocal %103 : vector<8x1xf32> -> vector<8x1xf32>
    %106 = vector.broadcast %105 : vector<8x1xf32> to vector<8x16xf32>
    %107 = arith.mulf %104, %106 : vector<8x16xf32>
    %108 = vector.extract_strided_slice %1 {offsets = [0, 48], sizes = [8, 16], strides = [1, 1]} : vector<8x64xf32> to vector<8x16xf32>
    %109 = vector.extract_strided_slice %3 {offsets = [0, 48], sizes = [8, 16], strides = [1, 1]} : vector<8x64xf32> to vector<8x16xf32>
    %110 = vector.extract_strided_slice %5 {offsets = [0, 48], sizes = [8, 16], strides = [1, 1]} : vector<8x64xf32> to vector<8x16xf32>
    %cst_31 = arith.constant dense<0.000000e+00> : vector<8xf32>
    %111 = vector.multi_reduction <add>, %108, %cst_31 [1] : vector<8x16xf32> to vector<8xf32>
    %112 = vector.shape_cast %111 : vector<8xf32> to vector<8x1xf32>
    %cst_32 = arith.constant 2.500000e-01 : f32
    %113 = vector.broadcast %cst_32 : f32 to vector<8x1xf32>
    %114 = arith.mulf %112, %113 : vector<8x1xf32>
    %cst_33 = arith.constant dense<0.000000e+00> : vector<8xf32>
    %115 = vector.multi_reduction <add>, %109, %cst_33 [1] : vector<8x16xf32> to vector<8xf32>
    %116 = vector.shape_cast %115 : vector<8xf32> to vector<8x1xf32>
    %117 = tpu.transpose %116, [1, 0] : vector<8x1xf32> -> vector<1x8xf32>
    %cst_34 = arith.constant dense<0xFF800000> : vector<1xf32>
    %118 = vector.multi_reduction <maximumf>, %116, %cst_34 [0] : vector<8x1xf32> to vector<1xf32>
    %119 = vector.shape_cast %118 : vector<1xf32> to vector<1x1xf32>
    %cst_35 = arith.constant dense<0x7F800000> : vector<1xf32>
    %120 = vector.multi_reduction <minimumf>, %116, %cst_35 [0] : vector<8x1xf32> to vector<1xf32>
    %121 = vector.shape_cast %120 : vector<1xf32> to vector<1x1xf32>
    %cst_36 = arith.constant 0.000000e+00 : f32
    %122 = vector.broadcast %cst_36 : f32 to vector<8x1xf32>
    %123 = arith.cmpf oge, %114, %122 : vector<8x1xf32>
    %124 = vector.shape_cast %119 : vector<1x1xf32> to vector<1x1xf32>
    %125 = vector.broadcast %124 : vector<1x1xf32> to vector<8x1xf32>
    %126 = vector.shape_cast %121 : vector<1x1xf32> to vector<1x1xf32>
    %127 = vector.broadcast %126 : vector<1x1xf32> to vector<8x1xf32>
    %128 = arith.select %123, %125, %127 : vector<8x1xi1>, vector<8x1xf32>
    %129 = arith.mulf %114, %128 : vector<8x1xf32>
    %130 = vector.broadcast %114 : vector<8x1xf32> to vector<8x8xf32>
    %131 = vector.broadcast %117 : vector<1x8xf32> to vector<8x8xf32>
    %132 = arith.mulf %130, %131 : vector<8x8xf32>
    %133 = vector.broadcast %129 : vector<8x1xf32> to vector<8x8xf32>
    %134 = arith.subf %132, %133 : vector<8x8xf32>
    %135 = math.exp %134 : vector<8x8xf32>
    %cst_37 = arith.constant dense<0.000000e+00> : vector<8xf32>
    %136 = vector.multi_reduction <add>, %135, %cst_37 [1] : vector<8x8xf32> to vector<8xf32>
    %137 = vector.shape_cast %136 : vector<8xf32> to vector<8x1xf32>
    %cst_38 = arith.constant dense<0.000000e+00> : vector<8x16xf32>
    %138 = tpu.matmul %135, %110, %cst_38 {dimension_numbers = #tpu.dot_dimension_numbers<[1], [0], [0], [1], [0, 0, 1, 1], [], []>} : vector<8x8xf32>, vector<8x16xf32>, vector<8x16xf32> -> vector<8x16xf32>
    %139 = tpu.reciprocal %137 : vector<8x1xf32> -> vector<8x1xf32>
    %140 = vector.broadcast %139 : vector<8x1xf32> to vector<8x16xf32>
    %141 = arith.mulf %138, %140 : vector<8x16xf32>
    %142 = tpu.concatenate %39, %73, %107, %141 in 1 : vector<8x16xf32>, vector<8x16xf32>, vector<8x16xf32>, vector<8x16xf32> -> vector<8x64xf32>
    %c0_39 = arith.constant 0 : index
    %c0_40 = arith.constant 0 : index
    %c0_41 = arith.constant 0 : index
    %143 = vector.load %arg4[%c0_39, %c0_40, %c0_41] : memref<1x8x64xf32, #tpu.memory_space<vmem>>, vector<1x8x64xf32>
    %144 = vector.shape_cast %143 : vector<1x8x64xf32> to vector<8x64xf32>
    %145 = vector.shape_cast %142 : vector<8x64xf32> to vector<1x8x64xf32>
    tpu.vector_store %arg4[%c0_39, %c0_40, %c0_41], %145 {strides = array<i32>} : memref<1x8x64xf32, #tpu.memory_space<vmem>>, vector<1x8x64xf32>,
    return
  }
  func.func @transform_0(%arg0: i32) -> (i32, i32, i32) {
    %c0_i32 = arith.constant 0 : i32
    %c0_i32_0 = arith.constant 0 : i32
    %c0_i32_1 = arith.constant 0 : i32
    return %arg0, %c0_i32, %c0_i32_0 : i32, i32, i32
  }
  func.func @transform_1(%arg0: i32) -> (i32, i32, i32) {
    %c0_i32 = arith.constant 0 : i32
    %c0_i32_0 = arith.constant 0 : i32
    %c0_i32_1 = arith.constant 0 : i32
    return %arg0, %c0_i32, %c0_i32_0 : i32, i32, i32
  }
  func.func @transform_2(%arg0: i32) -> (i32, i32, i32) {
    %c0_i32 = arith.constant 0 : i32
    %c0_i32_0 = arith.constant 0 : i32
    %c0_i32_1 = arith.constant 0 : i32
    return %arg0, %c0_i32, %c0_i32_0 : i32, i32, i32
  }
  func.func @transform_3(%arg0: i32) -> (i32, i32, i32) {
    %c0_i32 = arith.constant 0 : i32
    %c0_i32_0 = arith.constant 0 : i32
    %c0_i32_1 = arith.constant 0 : i32
    return %arg0, %c0_i32, %c0_i32_0 : i32, i32, i32
  }
}

</mosaic_0001>

<llo_original>
// kernel: tpu_custom_call.1
$region0: #{tpu_custom_call.1}
  #allocation0 [shape = 'u32[]', space=smem, size = 0x4, offset = 0x4, fixed_abs, tag = 'smem constant byte address 0x4 - core index']
  #allocation1 [shape = 'u32[72,128]{1,0:T(1,128)}', space=vmem, size = 0x9000, scoped, tag = 'internal scratch']
  %s0 = inlined_call_operand.hbm [shape: f32[2,8,64], index: 0, kind: input, shape index: {}]
  %s1 = inlined_call_operand.hbm [shape: f32[2,8,64], index: 1, kind: input, shape index: {}]
  %s2 = inlined_call_operand.hbm [shape: f32[2,8,64], index: 2, kind: input, shape index: {}]
  %s3 = inlined_call_operand.hbm [shape: f32[2,8,64], index: 3, kind: output, shape index: {}]
  %s4 = sld [smem:[#allocation0]]
  $region57: #{tpu_custom_call.1} parent=0
    _
  %s6 = ssub.s32 1, %s4
  %s7 = scalar_select 0, %s6, %s4
  $region1: #{tpu_custom_call.1} parent=0
    #allocation2 [shape = 'u8[8192]{0}', space=vmem, size = 0x2000, scoped, tag = 'input window, operand 0']
    #allocation3 [shape = 's32[2]{0}', space=sflag, size = 0x8, scoped, tag = 'scoped memory for tpu_custom_call.1']
    #allocation4 [shape = 's32[2]{0}', space=sflag, size = 0x8, scoped, tag = 'scoped memory for tpu_custom_call.1']
    #allocation5 [shape = 'u8[8192]{0}', space=vmem, size = 0x2000, scoped, tag = 'input window, operand 1']
    #allocation6 [shape = 's32[2]{0}', space=sflag, size = 0x8, scoped, tag = 'scoped memory for tpu_custom_call.1']
    #allocation7 [shape = 'u8[8192]{0}', space=vmem, size = 0x2000, scoped, tag = 'input window, operand 2']
    #allocation8 [shape = 'u8[8192]{0}', space=vmem, size = 0x2000, scoped, tag = 'output window, operand 0']
    %8 = vsyncpa [#allocation3], 0
    %s9 = scalar_lea.sflag [#allocation3], 1
    %10 = vsyncpa %s9, 0
    %11 = vsyncpa [#allocation6], 0
    %s12 = scalar_lea.sflag [#allocation6], 1
    %13 = vsyncpa %s12, 0
    %14 = vsyncpa [#allocation4], 0
    %s15 = scalar_lea.sflag [#allocation4], 1
    %16 = vsyncpa %s15, 0
    loop: start=0, step=1, limit=4
    $region2: #{tpu_custom_call.1} parent=1 // loop_pre_header
      _
    $region3: #{tpu_custom_call.1} parent=1 // loop_header
      %s18 = sphi 0, %s22
      %p19 = scmp.ge.s32.totalorder %s18, 4
      %s28 = sphi 0, %s30
      %s31 = sphi 0, %s28
      %s32 = sphi 0, %s31
      %s48 = sphi 0, %s32
      %s54 = sphi 0, %s56
      %s57 = sphi 0, %s54
      %s58 = sphi 0, %s57
      %s74 = sphi 0, %s58
      %s80 = sphi 0, %s82
      %s83 = sphi 0, %s80
      %s84 = sphi 0, %s83
      %s100 = sphi 0, %s84
      %s106 = sphi 0, %s108
      %s109 = sphi 0, %s106
      %s110 = sphi 0, %s109
      %s126 = sphi 0, %s110
    $region4: #{tpu_custom_call.1} parent=1 // loop_header_branch
      %21 = sbr.rel (%p19) target = $region8
    $region5: #{tpu_custom_call.1} parent=1 // loop_body
      %s23 = ssub.s32 %s18, 1
      %s24 = ssub.s32 %s18, 2
      %s25 = sadd.s32 %s18, 1
      %s26 = ssub.s32 %s18, %s25
      %p27 = scmp.eq.s32.totalorder %s26, 0
      %s29 = sadd.s32 %s28, 1
      %s30 = scalar_select %p27, %s28, %s29
      %p33 = pneg %p27
      %p34 = scmp.eq.s32.totalorder %s18, 1
      %p35 = por %p33, %p34
      %p36 = scmp.ne.s32.totalorder %s28, %s31
      %p37 = scmp.eq.s32.totalorder %s18, 0
      %p38 = por %p36, %p37
      %p39 = scmp.ne.s32.totalorder %s28, %s31
      %p40 = scmp.eq.s32.totalorder %s23, 1
      %p41 = por %p39, %p40
      %p42 = scmp.ne.s32.totalorder %s31, %s32
      %p43 = scmp.eq.s32.totalorder %s23, 0
      %p44 = por %p42, %p43
      %p45 = scmp.ne.s32.totalorder %s31, %s32
      %p46 = scmp.eq.s32.totalorder %s24, 1
      %p47 = por %p45, %p46
      %p49 = scmp.ne.s32.totalorder %s32, %s48
      %p50 = scmp.eq.s32.totalorder %s24, 0
      %p51 = por %p49, %p50
      %s52 = ssub.s32 %s18, %s25
      %p53 = scmp.eq.s32.totalorder %s52, 0
      %s55 = sadd.s32 %s54, 1
      %s56 = scalar_select %p53, %s54, %s55
      %p59 = pneg %p53
      %p60 = scmp.eq.s32.totalorder %s18, 1
      %p61 = por %p59, %p60
      %p62 = scmp.ne.s32.totalorder %s54, %s57
      %p63 = scmp.eq.s32.totalorder %s18, 0
      %p64 = por %p62, %p63
      %p65 = scmp.ne.s32.totalorder %s54, %s57
      %p66 = scmp.eq.s32.totalorder %s23, 1
      %p67 = por %p65, %p66
      %p68 = scmp.ne.s32.totalorder %s57, %s58
      %p69 = scmp.eq.s32.totalorder %s23, 0
      %p70 = por %p68, %p69
      %p71 = scmp.ne.s32.totalorder %s57, %s58
      %p72 = scmp.eq.s32.totalorder %s24, 1
      %p73 = por %p71, %p72
      %p75 = scmp.ne.s32.totalorder %s58, %s74
      %p76 = scmp.eq.s32.totalorder %s24, 0
      %p77 = por %p75, %p76
      %s78 = ssub.s32 %s18, %s25
      %p79 = scmp.eq.s32.totalorder %s78, 0
      %s81 = sadd.s32 %s80, 1
      %s82 = scalar_select %p79, %s80, %s81
      %p85 = pneg %p79
      %p86 = scmp.eq.s32.totalorder %s18, 1
      %p87 = por %p85, %p86
      %p88 = scmp.ne.s32.totalorder %s80, %s83
      %p89 = scmp.eq.s32.totalorder %s18, 0
      %p90 = por %p88, %p89
      %p91 = scmp.ne.s32.totalorder %s80, %s83
      %p92 = scmp.eq.s32.totalorder %s23, 1
      %p93 = por %p91, %p92
      %p94 = scmp.ne.s32.totalorder %s83, %s84
      %p95 = scmp.eq.s32.totalorder %s23, 0
      %p96 = por %p94, %p95
      %p97 = scmp.ne.s32.totalorder %s83, %s84
      %p98 = scmp.eq.s32.totalorder %s24, 1
      %p99 = por %p97, %p98
      %p101 = scmp.ne.s32.totalorder %s84, %s100
      %p102 = scmp.eq.s32.totalorder %s24, 0
      %p103 = por %p101, %p102
      %s104 = ssub.s32 %s18, %s25
      %p105 = scmp.eq.s32.totalorder %s104, 0
      %s107 = sadd.s32 %s106, 1
      %s108 = scalar_select %p105, %s106, %s107
      %p111 = pneg %p105
      %p112 = scmp.eq.s32.totalorder %s18, 1
      %p113 = por %p111, %p112
      %p114 = scmp.ne.s32.totalorder %s106, %s109
      %p115 = scmp.eq.s32.totalorder %s18, 0
      %p116 = por %p114, %p115
      %p117 = scmp.ne.s32.totalorder %s106, %s109
      %p118 = scmp.eq.s32.totalorder %s23, 1
      %p119 = por %p117, %p118
      %p120 = scmp.ne.s32.totalorder %s109, %s110
      %p121 = scmp.eq.s32.totalorder %s23, 0
      %p122 = por %p120, %p121
      %p123 = scmp.ne.s32.totalorder %s109, %s110
      %p124 = scmp.eq.s32.totalorder %s24, 1
      %p125 = por %p123, %p124
      %p127 = scmp.ne.s32.totalorder %s110, %s126
      %p128 = scmp.eq.s32.totalorder %s24, 0
      %p129 = por %p127, %p128
      %p130 = scmp.le.s32.totalorder 1, %s18
      %p131 = scmp.lt.s32.totalorder %s18, 3
      %p132 = pnand %p130, %p131
      %p133 = pneg %p132
      // Predicated region
      $region9: #{tpu_custom_call.1} parent=5 // pred_check
        _
      $region10: #{tpu_custom_call.1} parent=5 // pred_check_branch
        %135 = sbr.rel (%p132) target = $region12
      $region11: #{tpu_custom_call.1} parent=5 // pred_region
        %s136 = ssub.s32 %s18, 1
      $region12: #{tpu_custom_call.1} parent=5 // pred_fallthru
        _
      %p137 = scmp.lt.s32.totalorder %s18, 2
      // Predicated region
      $region13: #{tpu_custom_call.1} parent=5 // pred_check
        %p138 = pneg %p137
      $region14: #{tpu_custom_call.1} parent=5 // pred_check_branch
        %140 = sbr.rel (%p138) target = $region16
      $region15: #{tpu_custom_call.1} parent=5 // pred_region
        // Predicated region
        $region17: #{tpu_custom_call.1} parent=15 // pred_check
          %p141 = pneg %p38
        $region18: #{tpu_custom_call.1} parent=15 // pred_check_branch
          %143 = sbr.rel (%p141) target = $region20
        $region19: #{tpu_custom_call.1} parent=15 // pred_region
          %s144 = sand.u32 %s28, 1
          %s145 = scalar_lea.sflag [#allocation3], %s144
          %s146 = sand.u32 %s28, 1
          %s147 = smul.addr %s146, 8
          %s148 = scalar_lea.vmem [#allocation2], %s147
          %150 = vsyncadd %s145, 0
          %s151 = smul.addr %s18, 8
          %s152 = scalar_lea.hbm %s0, %s151
          %s154 = sshll.u32 %s152, 4
          %s155 = int_to_ptr.hbm [resolvable:$true] %s154
          %s156 = sshll.u32 %s148, 4
          %s157 = int_to_ptr.vmem [resolvable:$true] %s156
          %159 = dma.hbm_to_vmem [thread:$0]  %s155, 128, %s157, %s145
        $region20: #{tpu_custom_call.1} parent=15 // pred_fallthru
          _
        // Predicated region
        $region21: #{tpu_custom_call.1} parent=15 // pred_check
          %p160 = pneg %p64
        $region22: #{tpu_custom_call.1} parent=15 // pred_check_branch
          %162 = sbr.rel (%p160) target = $region24
        $region23: #{tpu_custom_call.1} parent=15 // pred_region
          %s163 = sand.u32 %s18, 1
          %s164 = scalar_lea.sflag [#allocation6], %s163
          %s165 = sand.u32 %s54, 1
          %s166 = smul.addr %s165, 8
          %s167 = scalar_lea.vmem [#allocation5], %s166
          %169 = vsyncadd %s164, 0
          %s170 = smul.addr %s18, 8
          %s171 = scalar_lea.hbm %s1, %s170
          %s173 = sshll.u32 %s171, 4
          %s174 = int_to_ptr.hbm [resolvable:$true] %s173
          %s175 = sshll.u32 %s167, 4
          %s176 = int_to_ptr.vmem [resolvable:$true] %s175
          %178 = dma.hbm_to_vmem [thread:$0]  %s174, 128, %s176, %s164
        $region24: #{tpu_custom_call.1} parent=15 // pred_fallthru
          _
        // Predicated region
        $region25: #{tpu_custom_call.1} parent=15 // pred_check
          %p179 = pneg %p90
        $region26: #{tpu_custom_call.1} parent=15 // pred_check_branch
          %181 = sbr.rel (%p179) target = $region28
        $region27: #{tpu_custom_call.1} parent=15 // pred_region
          %s182 = sand.u32 %s18, 1
          %s183 = scalar_lea.sflag [#allocation6], %s182
          %s184 = sand.u32 %s80, 1
          %s185 = smul.addr %s184, 8
          %s186 = scalar_lea.vmem [#allocation7], %s185
          %188 = vsyncadd %s183, 0
          %s189 = smul.addr %s18, 8
          %s190 = scalar_lea.hbm %s2, %s189
          %s192 = sshll.u32 %s190, 4
          %s193 = int_to_ptr.hbm [resolvable:$true] %s192
          %s194 = sshll.u32 %s186, 4
          %s195 = int_to_ptr.vmem [resolvable:$true] %s194
          %197 = dma.hbm_to_vmem [thread:$0]  %s193, 128, %s195, %s183
        $region28: #{tpu_custom_call.1} parent=15 // pred_fallthru
          _
      $region16: #{tpu_custom_call.1} parent=5 // pred_fallthru
        _
      %p198 = scmp.le.s32.totalorder 1, %s18
      %p199 = scmp.lt.s32.totalorder %s18, 3
      %p200 = pnand %p198, %p199
      %p201 = pneg %p200
      // Predicated region
      $region29: #{tpu_custom_call.1} parent=5 // pred_check
        _
      $region30: #{tpu_custom_call.1} parent=5 // pred_check_branch
        %203 = sbr.rel (%p200) target = $region32
      $region31: #{tpu_custom_call.1} parent=5 // pred_region
        %s204 = ssub.s32 %s18, 1
        %s205 = sand.u32 %s31, 1
        %s206 = scalar_lea.sflag [#allocation3], %s205
        %s207 = sand.u32 %s31, 1
        %s208 = smul.addr %s207, 8
        %s209 = scalar_lea.vmem [#allocation2], %s208
        // Predicated region
        $region33: #{tpu_custom_call.1} parent=31 // pred_check
          %p210 = pneg %p44
        $region34: #{tpu_custom_call.1} parent=31 // pred_check_branch
          %212 = sbr.rel (%p210) target = $region36
        $region35: #{tpu_custom_call.1} parent=31 // pred_region
          %214 = dma.done %s206, 128
        $region36: #{tpu_custom_call.1} parent=31 // pred_fallthru
          _
        %s215 = sand.u32 %s23, 1
        %s216 = scalar_lea.sflag [#allocation6], %s215
        %s217 = sand.u32 %s57, 1
        %s218 = smul.addr %s217, 8
        %s219 = scalar_lea.vmem [#allocation5], %s218
        // Predicated region
        $region37: #{tpu_custom_call.1} parent=31 // pred_check
          %p220 = pneg %p70
        $region38: #{tpu_custom_call.1} parent=31 // pred_check_branch
          %222 = sbr.rel (%p220) target = $region40
        $region39: #{tpu_custom_call.1} parent=31 // pred_region
          %224 = dma.done %s216, 128
        $region40: #{tpu_custom_call.1} parent=31 // pred_fallthru
          _
        %s225 = sand.u32 %s23, 1
        %s226 = scalar_lea.sflag [#allocation6], %s225
        %s227 = sand.u32 %s83, 1
        %s228 = smul.addr %s227, 8
        %s229 = scalar_lea.vmem [#allocation7], %s228
        // Predicated region
        $region41: #{tpu_custom_call.1} parent=31 // pred_check
          %p230 = pneg %p96
        $region42: #{tpu_custom_call.1} parent=31 // pred_check_branch
          %232 = sbr.rel (%p230) target = $region44
        $region43: #{tpu_custom_call.1} parent=31 // pred_region
          %234 = dma.done %s226, 128
        $region44: #{tpu_custom_call.1} parent=31 // pred_fallthru
          _
        %s235 = sand.u32 %s31, 1
        %s236 = scalar_lea.sflag [#allocation3], %s235
        %s237 = sand.u32 %s31, 1
        %s238 = smul.addr %s237, 8
        %s239 = scalar_lea.vmem [#allocation2], %s238
        %p240 = pneg %p44
        %p241 = pneg %p41
        %s242 = sand.u32 %s23, 1
        %s243 = scalar_lea.sflag [#allocation6], %s242
        %s244 = sand.u32 %s57, 1
        %s245 = smul.addr %s244, 8
        %s246 = scalar_lea.vmem [#allocation5], %s245
        %p247 = pneg %p70
        %p248 = pneg %p67
        %s249 = sand.u32 %s23, 1
        %s250 = scalar_lea.sflag [#allocation6], %s249
        %s251 = sand.u32 %s83, 1
        %s252 = smul.addr %s251, 8
        %s253 = scalar_lea.vmem [#allocation7], %s252
        %p254 = pneg %p96
        %p255 = pneg %p93
        %p256 = pneg %p122
        %p257 = pneg %p119
        %s258 = sand.u32 %s109, 1
        %s259 = scalar_lea.sflag [#allocation4], %s258
        %s260 = sand.u32 %s109, 1
        %s261 = smul.addr %s260, 8
        %s262 = scalar_lea.vmem [#allocation8], %s261
        %v263 = vld [vmem:[%s209] sm:$0xff]
        %v264 = vld [vmem:[%s219] sm:$0xff]
        %v265 = vld [vmem:[%s229] sm:$0xff]
        %vm266 = vcmask 130048
        %v267 = vsel %vm266, %v263, 0.0
        %268 = vadd.xlane.f32.xlu0 %v267
        %v269 = vpop.xlane.xlu0 %268
        %v270 = vmul.f32 %v269, 0.25
        %v271 = vsel %vm266, %v264, 0.0
        %272 = vadd.xlane.f32.xlu0 %v271
        %v273 = vpop.xlane.xlu0 %272
        %274 = vxpose.xlu0.b32.start [1/16] %v273, 128
        %275 = vxpose.xlu0.b32.cont [2/16] 0.0, 128
        %276 = vxpose.xlu0.b32.cont [3/16] 0.0, 128
        %277 = vxpose.xlu0.b32.cont [4/16] 0.0, 128
        %278 = vxpose.xlu0.b32.cont [5/16] 0.0, 128
        %279 = vxpose.xlu0.b32.cont [6/16] 0.0, 128
        %280 = vxpose.xlu0.b32.cont [7/16] 0.0, 128
        %281 = vxpose.xlu0.b32.cont [8/16] 0.0, 128
        %282 = vxpose.xlu0.b32.cont [9/16] 0.0, 128
        %283 = vxpose.xlu0.b32.cont [10/16] 0.0, 128
        %284 = vxpose.xlu0.b32.cont [11/16] 0.0, 128
        %285 = vxpose.xlu0.b32.cont [12/16] 0.0, 128
        %286 = vxpose.xlu0.b32.cont [13/16] 0.0, 128
        %287 = vxpose.xlu0.b32.cont [14/16] 0.0, 128
        %288 = vxpose.xlu0.b32.cont [15/16] 0.0, 128
        %289 = vxpose.xlu0.b32.end [16/16] 0.0, 128
        %v290 = vpop.trf.xlu0
        %v291 = vpop.trf.xlu0
        %v292 = vpop.trf.xlu0
        %v293 = vpop.trf.xlu0
        %v294 = vpop.trf.xlu0
        %v295 = vpop.trf.xlu0
        %v296 = vpop.trf.xlu0
        %v297 = vpop.trf.xlu0
        %v298 = vpop.trf.xlu0
        %v299 = vpop.trf.xlu0
        %v300 = vpop.trf.xlu0
        %v301 = vpop.trf.xlu0
        %v302 = vpop.trf.xlu0
        %v303 = vpop.trf.xlu0
        %v304 = vpop.trf.xlu0
        %v305 = vpop.trf.xlu0
        %v306 = vrot.slane %v273, 4
        %v307 = vmax.f32 %v273, %v306
        %v308 = vrot.slane %v307, 2
        %v309 = vmax.f32 %v307, %v308
        %v310 = vrot.slane %v309, 1
        %v311 = vmax.f32 %v309, %v310
        %v312 = vrot.slane %v273, 4
        %v313 = vmin.f32 %v273, %v312
        %v314 = vrot.slane %v313, 2
        %v315 = vmin.f32 %v313, %v314
        %v316 = vrot.slane %v315, 1
        %v317 = vmin.f32 %v315, %v316
        %vm318 = vcmp.ge.f32.partialorder %v270, 0.0
        %v319 = vsel %vm318, %v311, %v317
        %v320 = vmul.f32 %v270, %v319
        %v321 = vperm.slane %v290, 0
        %v322 = vmul.f32 %v270, %v321
        %v323 = vsub.f32 %v322, %v320
        %v324 = vmul.f32 %v323, 1.442695
        %v325 = vpow.pop %v324
        %vm326 = vcmask 64512
        %v327 = vsel %vm326, %v325, 0.0
        %328 = vadd.xlane.f32.xlu0 %v327
        %v329 = vpop.xlane.xlu0 %328
        %v331 = vsel %vm326, %v325, 0
        %333 = vmatpush.msra.mxu0 0.0
        %334 = vmatpush.msra.mxu0 0.0
        %335 = vmatpush.msra.mxu0 0.0
        %336 = vmatpush.msra.mxu0 0.0
        %337 = vmatpush.msra.mxu0 0.0
        %338 = vmatpush.msra.mxu0 0.0
        %339 = vmatpush.msra.mxu0 0.0
        %340 = vmatpush.msra.mxu0 0.0
        %341 = vmatpush.msra.mxu0 0.0
        %342 = vmatpush.msra.mxu0 0.0
        %343 = vmatpush.msra.mxu0 0.0
        %344 = vmatpush.msra.mxu0 0.0
        %345 = vmatpush.msra.mxu0 0.0
        %346 = vmatpush.msra.mxu0 0.0
        %347 = vmatpush.msra.mxu0 0.0
        %348 = vmatpush.msra.mxu0 %v265
        %349 = vmatmul.f32.gmra.mxu0 %v331
        %v350 = vpop.f32.mrf.mxu0
        %v351 = vadd.f32 0.0, %v350
        %352 = vdwg.mxu0
        %v353 = vrcp.pop %v329
        %v354 = vmul.f32 %v329, %v353
        %v355 = vsub.f32 1.0, %v354
        %v356 = vmul.f32 %v353, %v355
        %v357 = vadd.f32 %v353, %v356
        %vm358 = vweird.f32 %v329
        %vm359 = vweird.f32 %v353
        %vm360 = vmor %vm358, %vm359
        %v361 = vsel %vm360, %v353, %v357
        %v362 = vand.u32 2147483647, %v329
        %vm363 = vcmp.eq.f32.partialorder %v362, 8.507059e+37
        %v364 = vand.u32 %v329, 2147483648
        %v365 = vor.u32 1.1754944e-38, %v364
        %v366 = vsel %vm363, %v365, %v361
        %v367 = vmul.f32 %v351, %v366
        %369 = vrot.lane.b32.xlu0 %v263, 112
        %v370 = vpop.permute.xlu0 %369
        %v372 = vsel %vm266, %v370, 0.0
        %373 = vadd.xlane.f32.xlu0 %v372
        %v374 = vpop.xlane.xlu0 %373
        %v375 = vmul.f32 %v374, 0.25
        %377 = vrot.lane.b32.xlu0 %v264, 112
        %v378 = vpop.permute.xlu0 %377
        %v380 = vsel %vm266, %v378, 0.0
        %381 = vadd.xlane.f32.xlu0 %v380
        %v382 = vpop.xlane.xlu0 %381
        %383 = vxpose.xlu0.b32.start [1/16] %v382, 128
        %384 = vxpose.xlu0.b32.cont [2/16] 0.0, 128
        %385 = vxpose.xlu0.b32.cont [3/16] 0.0, 128
        %386 = vxpose.xlu0.b32.cont [4/16] 0.0, 128
        %387 = vxpose.xlu0.b32.cont [5/16] 0.0, 128
        %388 = vxpose.xlu0.b32.cont [6/16] 0.0, 128
        %389 = vxpose.xlu0.b32.cont [7/16] 0.0, 128
        %390 = vxpose.xlu0.b32.cont [8/16] 0.0, 128
        %391 = vxpose.xlu0.b32.cont [9/16] 0.0, 128
        %392 = vxpose.xlu0.b32.cont [10/16] 0.0, 128
        %393 = vxpose.xlu0.b32.cont [11/16] 0.0, 128
        %394 = vxpose.xlu0.b32.cont [12/16] 0.0, 128
        %395 = vxpose.xlu0.b32.cont [13/16] 0.0, 128
        %396 = vxpose.xlu0.b32.cont [14/16] 0.0, 128
        %397 = vxpose.xlu0.b32.cont [15/16] 0.0, 128
        %398 = vxpose.xlu0.b32.end [16/16] 0.0, 128
        %v399 = vpop.trf.xlu0
        %v400 = vpop.trf.xlu0
        %v401 = vpop.trf.xlu0
        %v402 = vpop.trf.xlu0
        %v403 = vpop.trf.xlu0
        %v404 = vpop.trf.xlu0
        %v405 = vpop.trf.xlu0
        %v406 = vpop.trf.xlu0
        %v407 = vpop.trf.xlu0
        %v408 = vpop.trf.xlu0
        %v409 = vpop.trf.xlu0
        %v410 = vpop.trf.xlu0
        %v411 = vpop.trf.xlu0
        %v412 = vpop.trf.xlu0
        %v413 = vpop.trf.xlu0
        %v414 = vpop.trf.xlu0
        %v415 = vrot.slane %v382, 4
        %v416 = vmax.f32 %v382, %v415
        %v417 = vrot.slane %v416, 2
        %v418 = vmax.f32 %v416, %v417
        %v419 = vrot.slane %v418, 1
        %v420 = vmax.f32 %v418, %v419
        %v421 = vrot.slane %v382, 4
        %v422 = vmin.f32 %v382, %v421
        %v423 = vrot.slane %v422, 2
        %v424 = vmin.f32 %v422, %v423
        %v425 = vrot.slane %v424, 1
        %v426 = vmin.f32 %v424, %v425
        %vm427 = vcmp.ge.f32.partialorder %v375, 0.0
        %v428 = vsel %vm427, %v420, %v426
        %v429 = vmul.f32 %v375, %v428
        %v430 = vperm.slane %v399, 0
        %v431 = vmul.f32 %v375, %v430
        %v432 = vsub.f32 %v431, %v429
        %v433 = vmul.f32 %v432, 1.442695
        %v434 = vpow.pop %v433
        %v435 = vsel %vm326, %v434, 0.0
        %436 = vadd.xlane.f32.xlu0 %v435
        %v437 = vpop.xlane.xlu0 %436
        %439 = vrot.lane.b32.xlu0 %v265, 112
        %v440 = vpop.permute.xlu0 %439
        %v443 = vsel %vm326, %v434, 0
        %445 = vmatpush.msra.mxu0 0.0
        %446 = vmatpush.msra.mxu0 0.0
        %447 = vmatpush.msra.mxu0 0.0
        %448 = vmatpush.msra.mxu0 0.0
        %449 = vmatpush.msra.mxu0 0.0
        %450 = vmatpush.msra.mxu0 0.0
        %451 = vmatpush.msra.mxu0 0.0
        %452 = vmatpush.msra.mxu0 0.0
        %453 = vmatpush.msra.mxu0 0.0
        %454 = vmatpush.msra.mxu0 0.0
        %455 = vmatpush.msra.mxu0 0.0
        %456 = vmatpush.msra.mxu0 0.0
        %457 = vmatpush.msra.mxu0 0.0
        %458 = vmatpush.msra.mxu0 0.0
        %459 = vmatpush.msra.mxu0 0.0
        %460 = vmatpush.msra.mxu0 %v440
        %461 = vmatmul.f32.gmra.mxu0 %v443
        %v462 = vpop.f32.mrf.mxu0
        %v463 = vadd.f32 0.0, %v462
        %464 = vdwg.mxu0
        %v465 = vrcp.pop %v437
        %v466 = vmul.f32 %v437, %v465
        %v467 = vsub.f32 1.0, %v466
        %v468 = vmul.f32 %v465, %v467
        %v469 = vadd.f32 %v465, %v468
        %vm470 = vweird.f32 %v437
        %vm471 = vweird.f32 %v465
        %vm472 = vmor %vm470, %vm471
        %v473 = vsel %vm472, %v465, %v469
        %v474 = vand.u32 2147483647, %v437
        %vm475 = vcmp.eq.f32.partialorder %v474, 8.507059e+37
        %v476 = vand.u32 %v437, 2147483648
        %v477 = vor.u32 1.1754944e-38, %v476
        %v478 = vsel %vm475, %v477, %v473
        %v479 = vmul.f32 %v463, %v478
        %480 = vrot.lane.b32.xlu0 %v263, 96
        %v481 = vpop.permute.xlu0 %480
        %v483 = vsel %vm266, %v481, 0.0
        %484 = vadd.xlane.f32.xlu0 %v483
        %v485 = vpop.xlane.xlu0 %484
        %v486 = vmul.f32 %v485, 0.25
        %487 = vrot.lane.b32.xlu0 %v264, 96
        %v488 = vpop.permute.xlu0 %487
        %v490 = vsel %vm266, %v488, 0.0
        %491 = vadd.xlane.f32.xlu0 %v490
        %v492 = vpop.xlane.xlu0 %491
        %493 = vxpose.xlu0.b32.start [1/16] %v492, 128
        %494 = vxpose.xlu0.b32.cont [2/16] 0.0, 128
        %495 = vxpose.xlu0.b32.cont [3/16] 0.0, 128
        %496 = vxpose.xlu0.b32.cont [4/16] 0.0, 128
        %497 = vxpose.xlu0.b32.cont [5/16] 0.0, 128
        %498 = vxpose.xlu0.b32.cont [6/16] 0.0, 128
        %499 = vxpose.xlu0.b32.cont [7/16] 0.0, 128
        %500 = vxpose.xlu0.b32.cont [8/16] 0.0, 128
        %501 = vxpose.xlu0.b32.cont [9/16] 0.0, 128
        %502 = vxpose.xlu0.b32.cont [10/16] 0.0, 128
        %503 = vxpose.xlu0.b32.cont [11/16] 0.0, 128
        %504 = vxpose.xlu0.b32.cont [12/16] 0.0, 128
        %505 = vxpose.xlu0.b32.cont [13/16] 0.0, 128
        %506 = vxpose.xlu0.b32.cont [14/16] 0.0, 128
        %507 = vxpose.xlu0.b32.cont [15/16] 0.0, 128
        %508 = vxpose.xlu0.b32.end [16/16] 0.0, 128
        %v509 = vpop.trf.xlu0
        %v510 = vpop.trf.xlu0
        %v511 = vpop.trf.xlu0
        %v512 = vpop.trf.xlu0
        %v513 = vpop.trf.xlu0
        %v514 = vpop.trf.xlu0
        %v515 = vpop.trf.xlu0
        %v516 = vpop.trf.xlu0
        %v517 = vpop.trf.xlu0
        %v518 = vpop.trf.xlu0
        %v519 = vpop.trf.xlu0
        %v520 = vpop.trf.xlu0
        %v521 = vpop.trf.xlu0
        %v522 = vpop.trf.xlu0
        %v523 = vpop.trf.xlu0
        %v524 = vpop.trf.xlu0
        %v525 = vrot.slane %v492, 4
        %v526 = vmax.f32 %v492, %v525
        %v527 = vrot.slane %v526, 2
        %v528 = vmax.f32 %v526, %v527
        %v529 = vrot.slane %v528, 1
        %v530 = vmax.f32 %v528, %v529
        %v531 = vrot.slane %v492, 4
        %v532 = vmin.f32 %v492, %v531
        %v533 = vrot.slane %v532, 2
        %v534 = vmin.f32 %v532, %v533
        %v535 = vrot.slane %v534, 1
        %v536 = vmin.f32 %v534, %v535
        %vm537 = vcmp.ge.f32.partialorder %v486, 0.0
        %v538 = vsel %vm537, %v530, %v536
        %v539 = vmul.f32 %v486, %v538
        %v540 = vperm.slane %v509, 0
        %v541 = vmul.f32 %v486, %v540
        %v542 = vsub.f32 %v541, %v539
        %v543 = vmul.f32 %v542, 1.442695
        %v544 = vpow.pop %v543
        %v545 = vsel %vm326, %v544, 0.0
        %546 = vadd.xlane.f32.xlu0 %v545
        %v547 = vpop.xlane.xlu0 %546
        %548 = vrot.lane.b32.xlu0 %v265, 96
        %v549 = vpop.permute.xlu0 %548
        %v552 = vsel %vm326, %v544, 0
        %554 = vmatpush.msra.mxu0 0.0
        %555 = vmatpush.msra.mxu0 0.0
        %556 = vmatpush.msra.mxu0 0.0
        %557 = vmatpush.msra.mxu0 0.0
        %558 = vmatpush.msra.mxu0 0.0
        %559 = vmatpush.msra.mxu0 0.0
        %560 = vmatpush.msra.mxu0 0.0
        %561 = vmatpush.msra.mxu0 0.0
        %562 = vmatpush.msra.mxu0 0.0
        %563 = vmatpush.msra.mxu0 0.0
        %564 = vmatpush.msra.mxu0 0.0
        %565 = vmatpush.msra.mxu0 0.0
        %566 = vmatpush.msra.mxu0 0.0
        %567 = vmatpush.msra.mxu0 0.0
        %568 = vmatpush.msra.mxu0 0.0
        %569 = vmatpush.msra.mxu0 %v549
        %570 = vmatmul.f32.gmra.mxu0 %v552
        %v571 = vpop.f32.mrf.mxu0
        %v572 = vadd.f32 0.0, %v571
        %573 = vdwg.mxu0
        %v574 = vrcp.pop %v547
        %v575 = vmul.f32 %v547, %v574
        %v576 = vsub.f32 1.0, %v575
        %v577 = vmul.f32 %v574, %v576
        %v578 = vadd.f32 %v574, %v577
        %vm579 = vweird.f32 %v547
        %vm580 = vweird.f32 %v574
        %vm581 = vmor %vm579, %vm580
        %v582 = vsel %vm581, %v574, %v578
        %v583 = vand.u32 2147483647, %v547
        %vm584 = vcmp.eq.f32.partialorder %v583, 8.507059e+37
        %v585 = vand.u32 %v547, 2147483648
        %v586 = vor.u32 1.1754944e-38, %v585
        %v587 = vsel %vm584, %v586, %v582
        %v588 = vmul.f32 %v572, %v587
        %589 = vrot.lane.b32.xlu0 %v263, 80
        %v590 = vpop.permute.xlu0 %589
        %v592 = vsel %vm266, %v590, 0.0
        %593 = vadd.xlane.f32.xlu0 %v592
        %v594 = vpop.xlane.xlu0 %593
        %v595 = vmul.f32 %v594, 0.25
        %596 = vrot.lane.b32.xlu0 %v264, 80
        %v597 = vpop.permute.xlu0 %596
        %v599 = vsel %vm266, %v597, 0.0
        %600 = vadd.xlane.f32.xlu0 %v599
        %v601 = vpop.xlane.xlu0 %600
        %602 = vxpose.xlu0.b32.start [1/16] %v601, 128
        %603 = vxpose.xlu0.b32.cont [2/16] 0.0, 128
        %604 = vxpose.xlu0.b32.cont [3/16] 0.0, 128
        %605 = vxpose.xlu0.b32.cont [4/16] 0.0, 128
        %606 = vxpose.xlu0.b32.cont [5/16] 0.0, 128
        %607 = vxpose.xlu0.b32.cont [6/16] 0.0, 128
        %608 = vxpose.xlu0.b32.cont [7/16] 0.0, 128
        %609 = vxpose.xlu0.b32.cont [8/16] 0.0, 128
        %610 = vxpose.xlu0.b32.cont [9/16] 0.0, 128
        %611 = vxpose.xlu0.b32.cont [10/16] 0.0, 128
        %612 = vxpose.xlu0.b32.cont [11/16] 0.0, 128
        %613 = vxpose.xlu0.b32.cont [12/16] 0.0, 128
        %614 = vxpose.xlu0.b32.cont [13/16] 0.0, 128
        %615 = vxpose.xlu0.b32.cont [14/16] 0.0, 128
        %616 = vxpose.xlu0.b32.cont [15/16] 0.0, 128
        %617 = vxpose.xlu0.b32.end [16/16] 0.0, 128
        %v618 = vpop.trf.xlu0
        %v619 = vpop.trf.xlu0
        %v620 = vpop.trf.xlu0
        %v621 = vpop.trf.xlu0
        %v622 = vpop.trf.xlu0
        %v623 = vpop.trf.xlu0
        %v624 = vpop.trf.xlu0
        %v625 = vpop.trf.xlu0
        %v626 = vpop.trf.xlu0
        %v627 = vpop.trf.xlu0
        %v628 = vpop.trf.xlu0
        %v629 = vpop.trf.xlu0
        %v630 = vpop.trf.xlu0
        %v631 = vpop.trf.xlu0
        %v632 = vpop.trf.xlu0
        %v633 = vpop.trf.xlu0
        %v634 = vrot.slane %v601, 4
        %v635 = vmax.f32 %v601, %v634
        %v636 = vrot.slane %v635, 2
        %v637 = vmax.f32 %v635, %v636
        %v638 = vrot.slane %v637, 1
        %v639 = vmax.f32 %v637, %v638
        %v640 = vrot.slane %v601, 4
        %v641 = vmin.f32 %v601, %v640
        %v642 = vrot.slane %v641, 2
        %v643 = vmin.f32 %v641, %v642
        %v644 = vrot.slane %v643, 1
        %v645 = vmin.f32 %v643, %v644
        %vm646 = vcmp.ge.f32.partialorder %v595, 0.0
        %v647 = vsel %vm646, %v639, %v645
        %v648 = vmul.f32 %v595, %v647
        %v649 = vperm.slane %v618, 0
        %v650 = vmul.f32 %v595, %v649
        %v651 = vsub.f32 %v650, %v648
        %v652 = vmul.f32 %v651, 1.442695
        %v653 = vpow.pop %v652
        %v654 = vsel %vm326, %v653, 0.0
        %655 = vadd.xlane.f32.xlu0 %v654
        %v656 = vpop.xlane.xlu0 %655
        %657 = vrot.lane.b32.xlu0 %v265, 80
        %v658 = vpop.permute.xlu0 %657
        %v661 = vsel %vm326, %v653, 0
        %663 = vmatpush.msra.mxu0 0.0
        %664 = vmatpush.msra.mxu0 0.0
        %665 = vmatpush.msra.mxu0 0.0
        %666 = vmatpush.msra.mxu0 0.0
        %667 = vmatpush.msra.mxu0 0.0
        %668 = vmatpush.msra.mxu0 0.0
        %669 = vmatpush.msra.mxu0 0.0
        %670 = vmatpush.msra.mxu0 0.0
        %671 = vmatpush.msra.mxu0 0.0
        %672 = vmatpush.msra.mxu0 0.0
        %673 = vmatpush.msra.mxu0 0.0
        %674 = vmatpush.msra.mxu0 0.0
        %675 = vmatpush.msra.mxu0 0.0
        %676 = vmatpush.msra.mxu0 0.0
        %677 = vmatpush.msra.mxu0 0.0
        %678 = vmatpush.msra.mxu0 %v658
        %679 = vmatmul.f32.gmra.mxu0 %v661
        %v680 = vpop.f32.mrf.mxu0
        %v681 = vadd.f32 0.0, %v680
        %682 = vdwg.mxu0
        %v683 = vrcp.pop %v656
        %v684 = vmul.f32 %v656, %v683
        %v685 = vsub.f32 1.0, %v684
        %v686 = vmul.f32 %v683, %v685
        %v687 = vadd.f32 %v683, %v686
        %vm688 = vweird.f32 %v656
        %vm689 = vweird.f32 %v683
        %vm690 = vmor %vm688, %vm689
        %v691 = vsel %vm690, %v683, %v687
        %v692 = vand.u32 2147483647, %v656
        %vm693 = vcmp.eq.f32.partialorder %v692, 8.507059e+37
        %v694 = vand.u32 %v656, 2147483648
        %v695 = vor.u32 1.1754944e-38, %v694
        %v696 = vsel %vm693, %v695, %v691
        %v697 = vmul.f32 %v681, %v696
        %699 = vrot.lane.b32.xlu0 %v479, 16
        %v700 = vpop.permute.xlu0 %699
        %703 = vrot.lane.b32.xlu0 %v588, 32
        %v704 = vpop.permute.xlu0 %703
        %707 = vrot.lane.b32.xlu0 %v697, 48
        %v708 = vpop.permute.xlu0 %707
        %v710 = vsel %vm266, %v367, %v700
        %vm711 = vcmask 261120
        %v712 = vsel %vm711, %v710, %v704
        %vm713 = vcmask 392192
        %v714 = vsel %vm713, %v712, %v708
        %vm715 = vcmask 523264
        %716 = vst.msk [vmem:[%s262] sm:$0xff] %vm715, %v714
        %s717 = sand.u32 %s109, 1
        %s718 = scalar_lea.sflag [#allocation4], %s717
        %s719 = sand.u32 %s109, 1
        %s720 = smul.addr %s719, 8
        %s721 = scalar_lea.vmem [#allocation8], %s720
        // Predicated region
        $region45: #{tpu_custom_call.1} parent=31 // pred_check
          %p722 = pneg %p119
        $region46: #{tpu_custom_call.1} parent=31 // pred_check_branch
          %724 = sbr.rel (%p722) target = $region48
        $region47: #{tpu_custom_call.1} parent=31 // pred_region
          %726 = vsyncadd %s718, 0
          %s727 = smul.addr %s23, 8
          %s728 = scalar_lea.hbm %s3, %s727
          %s730 = sshll.u32 %s721, 4
          %s731 = int_to_ptr.vmem [resolvable:$true] %s730
          %s732 = sshll.u32 %s728, 4
          %s733 = int_to_ptr.hbm [resolvable:$true] %s732
          %735 = dma.vmem_to_hbm [thread:$0]  %s731, 128, %s733, %s718
        $region48: #{tpu_custom_call.1} parent=31 // pred_fallthru
          _
      $region32: #{tpu_custom_call.1} parent=5 // pred_fallthru
        _
      %p736 = scmp.le.s32.totalorder 2, %s18
      // Predicated region
      $region49: #{tpu_custom_call.1} parent=5 // pred_check
        %p737 = pneg %p736
      $region50: #{tpu_custom_call.1} parent=5 // pred_check_branch
        %739 = sbr.rel (%p737) target = $region52
      $region51: #{tpu_custom_call.1} parent=5 // pred_region
        %s740 = ssub.s32 %s18, 2
        // Predicated region
        $region53: #{tpu_custom_call.1} parent=51 // pred_check
          %p741 = pneg %p125
        $region54: #{tpu_custom_call.1} parent=51 // pred_check_branch
          %743 = sbr.rel (%p741) target = $region56
        $region55: #{tpu_custom_call.1} parent=51 // pred_region
          %s744 = sand.u32 %s110, 1
          %s745 = scalar_lea.sflag [#allocation4], %s744
          %s746 = sand.u32 %s110, 1
          %s747 = smul.addr %s746, 8
          %s748 = scalar_lea.vmem [#allocation8], %s747
          %750 = dma.done %s745, 128
        $region56: #{tpu_custom_call.1} parent=51 // pred_fallthru
          _
      $region52: #{tpu_custom_call.1} parent=5 // pred_fallthru
        _
    $region6: #{tpu_custom_call.1} parent=1 // loop_footer
      %s22 = sadd.s32 1, %s18
    $region7: #{tpu_custom_call.1} parent=1 // loop_footer_branch
      %17 = sbr.rel target = $region3
    $region8: #{tpu_custom_call.1} parent=1 // loop_exit
      _
    %751 = vsyncpa [#allocation3], 1
    %s752 = scalar_lea.sflag [#allocation3], 1
    %753 = vsyncpa %s752, 1
    %754 = vsyncpa [#allocation6], 1
    %s755 = scalar_lea.sflag [#allocation6], 1
    %756 = vsyncpa %s755, 1
    %757 = vsyncpa [#allocation4], 1
    %s758 = scalar_lea.sflag [#allocation4], 1
    %759 = vsyncpa %s758, 1

</llo_original>
